<compile_context>
chip_gen: v6e
topology: v6e:2x2x1
jax: 0.10.0
libtpu: 0.0.40
codegen_flags: <defaults>
</compile_context>

<pallas_src>
import functools
import math
import numpy as np
import jax
import jax.numpy as jnp
from jax import lax
from jax.experimental import pallas as pl
from jax.experimental.pallas import tpu as pltpu


# -----------------------------------------------------------------------------
# Synthetic circuit structure ("circuit.to_qir()" equivalent).
# Rotation-gate count equals len(alpha) = 3*num_qubits + 4*num_blocks,
# matching SQC's parameter indexing (adjusted_index = i - #cz_so_far).
# -----------------------------------------------------------------------------
def build_qir(num_qubits, num_blocks):
    blocks = []
    for q in range(num_qubits):                       # initial layer
        blocks.append({"name": "ry", "index": (q,)})
        blocks.append({"name": "rz", "index": (q,)})
        blocks.append({"name": "ry", "index": (q,)})
    for b in range(num_blocks):                       # entangling blocks
        for q in range(num_qubits - 1):
            blocks.append({"name": "cz", "index": (q, q + 1)})
        q0 = b % num_qubits
        q1 = (b + 1) % num_qubits
        blocks.append({"name": "ry", "index": (q0,)})
        blocks.append({"name": "rz", "index": (q0,)})
        blocks.append({"name": "ry", "index": (q1,)})
        blocks.append({"name": "rz", "index": (q1,)})
    return blocks


# -----------------------------------------------------------------------------
# Gate construction glue (numpy).  tensorcircuit conventions:
#   ry(t) = exp(-i t Y / 2),  rz(t) = exp(-i t Z / 2),  qubit 0 = MSB.
# -----------------------------------------------------------------------------
_I2 = np.eye(2, dtype=np.complex128)


def _ry(theta):
    c, s = math.cos(theta / 2.0), math.sin(theta / 2.0)
    return np.array([[c, -s], [s, c]], dtype=np.complex128)


def _rz(theta):
    return np.array(
        [[np.exp(-1j * theta / 2.0), 0.0], [0.0, np.exp(1j * theta / 2.0)]],
        dtype=np.complex128,
    )


def _single_qubit_full(u, q, nq):
    m = np.array([[1.0]], dtype=np.complex128)
    for k in range(nq):
        m = np.kron(m, u if k == q else _I2)
    return m


def _cz_diag(a, b, nq):
    dim = 2 ** nq
    d = np.ones(dim, dtype=np.complex128)
    for idx in range(dim):
        if ((idx >> (nq - 1 - a)) & 1) and ((idx >> (nq - 1 - b)) & 1):
            d[idx] = -1.0
    return d


def build_fused_gates(qir, weight, nq):
    """Fuse the gate stream into 1 + num_blocks dense (dim, dim) unitaries.

    CZ gates are never materialized as dense matrices: their +/-1 diagonals
    are folded into the following rotation layer by column scaling.  Runs of
    commuting single-qubit rotations are combined per-qubit (2x2 products)
    and expanded once via a kron chain.  All host work is O(dim^2); no dense
    host matmuls.  Parameter indexing (adjusted_index = i - #cz_so_far)
    matches SQC exactly.
    """
    dim = 2 ** nq
    fused = []
    diag = np.ones(dim, dtype=np.complex128)
    rots = {}            # qubit -> accumulated 2x2 (product in application order)
    has_rot = False
    has_diag = False

    def flush():
        nonlocal diag, rots, has_rot, has_diag
        if not has_rot and not has_diag:
            return
        if has_rot:
            m = np.array([[1.0]], dtype=np.complex128)
            for q in range(nq):
                m = np.kron(m, rots.get(q, _I2))
            g = m * diag[None, :]        # rotations applied AFTER the CZ diagonal
        else:
            g = np.diag(diag)
        fused.append(g)
        diag = np.ones(dim, dtype=np.complex128)
        rots = {}
        has_rot = False
        has_diag = False

    label = 0
    for i, block in enumerate(qir):
        gate = block["name"]
        qubits = block["index"]
        if gate in ("ry", "rz"):
            theta = float(weight[i - label])
            u = _ry(theta) if gate == "ry" else _rz(theta)
            q = qubits[0]
            rots[q] = u @ rots.get(q, _I2)
            has_rot = True
        elif gate == "cz":
            if has_rot:
                flush()                  # diagonal after rotations: new group
            diag *= _cz_diag(qubits[0], qubits[1], nq)
            has_diag = True
            label += 1
            # TODO(synk): 'noise' circuit_state (general_kraus depolarizing
            # channels) needs density-matrix / trajectory simulation; only the
            # 'ideal' state-vector path is implemented.
    flush()
    return fused


# -----------------------------------------------------------------------------
# Real block form for row-vector application:
#   state row s = [re | im]  (1, 2*dim)
#   s <- s @ M,  M = [[G_re^T, G_im^T], [-G_im^T, G_re^T]]   (2*dim, 2*dim)
# -----------------------------------------------------------------------------
def to_block_real(g):
    gre_t = np.ascontiguousarray(g.real.T)
    gim_t = np.ascontiguousarray(g.imag.T)
    top = np.concatenate([gre_t, gim_t], axis=1)
    bot = np.concatenate([-gim_t, gre_t], axis=1)
    return np.concatenate([top, bot], axis=0)


# -----------------------------------------------------------------------------
# Pallas kernels.
# -----------------------------------------------------------------------------
def sqc_matprod_kernel(gates_ref, s0_ref, probs_ref, acc_ref, *, unroll):
    """Accumulate P = M_1 @ M_2 @ ... across grid steps with (2d,2d) MXU
    matmuls; apply the (1,2d) state once on the last step."""
    k = pl.program_id(0)
    last = pl.num_programs(0) - 1
    chunk = gates_ref.shape[0]
    two = acc_ref.shape[0]

    @pl.when(k == 0)
    def _():
        r = lax.broadcasted_iota(jnp.int32, (two, two), 0)
        c = lax.broadcasted_iota(jnp.int32, (two, two), 1)
        acc_ref[...] = (r == c).astype(jnp.float32)

    def body(i, p):
        g = gates_ref[i].astype(jnp.float32)
        return jnp.dot(p, g, preferred_element_type=jnp.float32)

    p = lax.fori_loop(0, chunk, body, acc_ref[...], unroll=unroll)

    @pl.when(k != last)                  # last-step writeback is dead work
    def _():
        acc_ref[...] = p

    @pl.when(k == last)
    def _():
        s = jnp.dot(s0_ref[...].astype(jnp.float32), p,
                    preferred_element_type=jnp.float32)
        d = probs_ref.shape[1]
        re = s[:, :d]
        im = s[:, d:]
        probs_ref[...] = re * re + im * im


def sqc_matvec_kernel(gates_ref, s0_ref, probs_ref, state_ref, *, unroll):
    """Fallback for large dim: chain of (1,2d)@(2d,2d) matvecs (O(d^2)/gate)."""
    k = pl.program_id(0)
    last = pl.num_programs(0) - 1
    chunk = gates_ref.shape[0]

    @pl.when(k == 0)
    def _():
        state_ref[...] = s0_ref[...].astype(jnp.float32)

    def body(i, s):
        g = gates_ref[i].astype(jnp.float32)
        return jnp.dot(s, g, preferred_element_type=jnp.float32)

    s = lax.fori_loop(0, chunk, body, state_ref[...], unroll=unroll)

    @pl.when(k != last)
    def _():
        state_ref[...] = s

    @pl.when(k == last)
    def _():
        d = probs_ref.shape[1]
        re = s[:, :d]
        im = s[:, d:]
        probs_ref[...] = re * re + im * im


# -----------------------------------------------------------------------------
# Generation-aware chunk planning + pallas_call factory.
# -----------------------------------------------------------------------------
def _cdiv(a, b):
    return -(-a // b)


def _round_up(x, m):
    return ((x + m - 1) // m) * m


def _vmem_capacity_bytes():
    try:
        cap = getattr(pltpu.get_tpu_info(), "vmem_capacity_bytes", None)
        if cap:
            return int(cap)
    except Exception:
        pass
    return 64 << 20          # conservative (v7x physical VMEM per TC)


def plan_chunking(num_gates, two, gate_itemsize):
    vmem_cap = _vmem_capacity_bytes()
    vmem_limit = int(min(vmem_cap // 2, 48 << 20))          # scoped request
    per_block_cap = min(6 << 20, vmem_limit // 4)            # per DMA buffer
    # (8,128) layout padding: sublanes -> mult of 8, lanes -> mult of 128.
    padded_gate_bytes = _round_up(two, 8) * _round_up(two, 128) * gate_itemsize
    max_chunk = max(1, per_block_cap // padded_gate_bytes)
    # Prefer >= 2 grid steps so chunk k+1 DMA overlaps chunk k compute.
    chunk = max(1, min(max_chunk, _cdiv(num_gates, 2) if num_gates >= 2 else 1))
    n_steps = _cdiv(num_gates, chunk)
    return chunk, n_steps, vmem_limit


def make_sqc_callable(n_steps, chunk, two, dim, gate_dtype, vmem_limit):
    use_matprod = two <= 512
    # Cap the unroll: full unroll only while a gate tile fits comfortably in
    # vregs (2d <= 128); otherwise partial unroll avoids spill traffic.
    unroll = chunk if two <= 128 else max(1, min(chunk, 4))
    if use_matprod:
        kern = functools.partial(sqc_matprod_kernel, unroll=unroll)
        scratch = pltpu.VMEM((two, two), jnp.float32)
    else:
        # TODO(synk): for very large dim a second grid axis tiling each gate
        # into column panels would be needed once one gate exceeds VMEM.
        kern = functools.partial(sqc_matvec_kernel, unroll=unroll)
        scratch = pltpu.VMEM((1, two), jnp.float32)

    fn = pl.pallas_call(
        kern,
        out_shape=jax.ShapeDtypeStruct((1, dim), jnp.float32),
        grid_spec=pltpu.PrefetchScalarGridSpec(
            num_scalar_prefetch=0,
            grid=(n_steps,),
            in_specs=[
                pl.BlockSpec((chunk, two, two), lambda k: (k, 0, 0)),
                pl.BlockSpec((1, two), lambda k: (0, 0)),
            ],
            out_specs=pl.BlockSpec((1, dim), lambda k: (0, 0)),
            scratch_shapes=[scratch],
        ),
        compiler_params=pltpu.CompilerParams(
            dimension_semantics=("arbitrary",),
            vmem_limit_bytes=vmem_limit),
    )
    return jax.jit(fn)


# -----------------------------------------------------------------------------
# SQC module equivalent (forward semantics preserved: single state, self.alpha).
# -----------------------------------------------------------------------------
class SQCPallas:
    def __init__(self, num_qubits, num_blocks, circuit_qir, input_state,
                 circuit_state="ideal", key=None, gate_dtype=jnp.float32):
        self.num_qubits = num_qubits
        self.num_blocks = num_blocks
        self.qir = circuit_qir
        self.input_state = np.asarray(input_state, dtype=np.complex128)
        self.circuit_state = circuit_state
        self.gate_dtype = gate_dtype
        n_params = 3 * num_qubits + 4 * num_blocks
        key = jax.random.PRNGKey(0) if key is None else key
        # torch.nn.init.uniform_(tensor, b=2*pi) equivalent
        self.alpha = jax.random.uniform(
            key, (n_params,), dtype=jnp.float32,
            minval=0.0, maxval=2.0 * math.pi)
        # caches: structural key -> jitted pallas callable; alpha bytes -> data
        self._fn_cache = {}
        self._data_key = None
        self._data = None     # (fn, gates_dev, s0_dev)

    def _build(self, weight):
        nq = self.num_qubits
        dim = 2 ** nq
        two = 2 * dim
        fused = build_fused_gates(self.qir, weight, nq)
        mats = [to_block_real(g) for g in fused]
        L = len(mats)

        itemsize = jnp.dtype(self.gate_dtype).itemsize
        chunk, n_steps, vmem_limit = plan_chunking(L, two, itemsize)
        pad_L = n_steps * chunk
        if pad_L > L:
            mats.extend([np.eye(two, dtype=np.float64)] * (pad_L - L))
        gates_dev = jnp.asarray(np.stack(mats), dtype=self.gate_dtype)

        psi0 = self.input_state
        s0 = np.concatenate([psi0.real, psi0.imag]).reshape(1, two)
        s0_dev = jnp.asarray(s0, dtype=jnp.float32)

        skey = (n_steps, chunk, two, dim, str(self.gate_dtype), vmem_limit)
        if skey not in self._fn_cache:
            self._fn_cache[skey] = make_sqc_callable(
                n_steps, chunk, two, dim, self.gate_dtype, vmem_limit)
        return self._fn_cache[skey], gates_dev, s0_dev

    def forward(self, alpha=None, scheme=None):
        # Mirrors the PyTorch forward: arguments ignored, self.alpha is used.
        weight = np.asarray(self.alpha, dtype=np.float64)
        data_key = weight.tobytes()
        if self._data_key != data_key:
            self._data = self._build(weight)   # host fusion + upload only when
            self._data_key = data_key          # parameters actually change
        fn, gates_dev, s0_dev = self._data
        probs = fn(gates_dev, s0_dev)
        return probs[0]

    __call__ = forward


# -----------------------------------------------------------------------------
# Independent per-gate (unfused) reference, mirroring the original module.
# -----------------------------------------------------------------------------
def reference_probs(qir, weight, nq, psi0):
    psi = np.asarray(psi0, dtype=np.complex128).copy()
    label = 0
    for i, block in enumerate(qir):
        gate = block["name"]
        qubits = block["index"]
        if gate in ("ry", "rz"):
            theta = float(weight[i - label])
            u = _ry(theta) if gate == "ry" else _rz(theta)
            psi = _single_qubit_full(u, qubits[0], nq) @ psi
        elif gate == "cz":
            psi = psi * _cz_diag(qubits[0], qubits[1], nq)
            label += 1
    return np.abs(psi) ** 2


if __name__ == "__main__":
    num_qubits = 4
    num_blocks = 3
    dim = 2 ** num_qubits

    qir = build_qir(num_qubits, num_blocks)
    psi0 = np.zeros(dim, dtype=np.complex128)
    psi0[0] = 1.0  # |0...0>

    model = SQCPallas(num_qubits, num_blocks, qir, psi0,
                      circuit_state="ideal", key=jax.random.PRNGKey(0))

    probs = model(None, None)
    probs = jax.block_until_ready(probs)
    # second call exercises the cached (no host-rebuild / no re-upload) path
    probs2 = jax.block_until_ready(model(None, None))

    ref = reference_probs(qir, np.asarray(model.alpha, dtype=np.float64),
                          num_qubits, psi0)

    assert probs.shape == (dim,)
    np.testing.assert_allclose(np.asarray(probs), ref, rtol=1e-4, atol=1e-5)
    np.testing.assert_allclose(np.asarray(probs2), ref, rtol=1e-4, atol=1e-5)
    np.testing.assert_allclose(float(np.sum(np.asarray(probs))), 1.0, atol=1e-4)
    print("KERNEL_OK")
</pallas_src>

<mosaic_0001>
module attributes {stable_mosaic.version = 11 : i64} {
  func.func @sqc_matprod_kernel(%arg0: i32, %arg1: memref<2x32x32xf32, #tpu.memory_space<vmem>>, %arg2: memref<1x32xf32, #tpu.memory_space<vmem>>, %arg3: memref<1x16xf32, #tpu.memory_space<vmem>>, %arg4: memref<32x32xf32, #tpu.memory_space<vmem>>) attributes {dimension_semantics = [#tpu.dimension_semantics<arbitrary>], iteration_bounds = array<i64: 2>, scalar_prefetch = 0 : i64, scratch_operands = 1 : i64, tpu.core_type = #tpu.core_type<tc>, window_params = [{transform_indices = @transform_0, window_bounds = array<i64: 2, 32, 32>}, {pipeline_mode = #tpu.pipeline_mode<synchronous>, transform_indices = @transform_1, window_bounds = array<i64: 1, 32>}, {pipeline_mode = #tpu.pipeline_mode<synchronous>, transform_indices = @transform_2, window_bounds = array<i64: 1, 16>}]} {
    %c0_i32 = arith.constant 0 : i32
    %0 = arith.cmpi eq, %arg0, %c0_i32 : i32
    %1 = arith.extui %0 : i1 to i32
    %c0_i32_0 = arith.constant 0 : i32
    %2 = arith.cmpi ne, %1, %c0_i32_0 : i32
    scf.if %2 {
      %18 = tpu.iota {dimensions = array<i32: 0>} : vector<32x32xi32>
      %19 = tpu.iota {dimensions = array<i32: 1>} : vector<32x32xi32>
      %20 = arith.cmpi eq, %18, %19 : vector<32x32xi32>
      %21 = arith.extui %20 : vector<32x32xi1> to vector<32x32xi32>
      %22 = arith.sitofp %21 : vector<32x32xi32> to vector<32x32xf32>
      %c0_12 = arith.constant 0 : index
      %c0_13 = arith.constant 0 : index
      %23 = vector.load %arg4[%c0_12, %c0_13] : memref<32x32xf32, #tpu.memory_space<vmem>>, vector<32x32xf32>
      tpu.vector_store %arg4[%c0_12, %c0_13], %22 {strides = array<i32>} : memref<32x32xf32, #tpu.memory_space<vmem>>, vector<32x32xf32>,
    } else {
    }
    %c0 = arith.constant 0 : index
    %c0_1 = arith.constant 0 : index
    %3 = vector.load %arg4[%c0, %c0_1] : memref<32x32xf32, #tpu.memory_space<vmem>>, vector<32x32xf32>
    %c0_i32_2 = arith.constant 0 : i32
    %4 = arith.index_cast %c0_i32_2 : i32 to index
    %c0_3 = arith.constant 0 : index
    %c0_4 = arith.constant 0 : index
    %5 = vector.load %arg1[%4, %c0_3, %c0_4] : memref<2x32x32xf32, #tpu.memory_space<vmem>>, vector<1x32x32xf32>
    %6 = vector.shape_cast %5 : vector<1x32x32xf32> to vector<32x32xf32>
    %cst = arith.constant dense<0.000000e+00> : vector<32x32xf32>
    %7 = tpu.matmul %3, %6, %cst {dimension_numbers = #tpu.dot_dimension_numbers<[1], [0], [0], [1], [0, 0, 1, 1], [], []>} : vector<32x32xf32>, vector<32x32xf32>, vector<32x32xf32> -> vector<32x32xf32>
    %c1_i32 = arith.constant 1 : i32
    %8 = arith.index_cast %c1_i32 : i32 to index
    %c0_5 = arith.constant 0 : index
    %c0_6 = arith.constant 0 : index
    %9 = vector.load %arg1[%8, %c0_5, %c0_6] : memref<2x32x32xf32, #tpu.memory_space<vmem>>, vector<1x32x32xf32>
    %10 = vector.shape_cast %9 : vector<1x32x32xf32> to vector<32x32xf32>
    %cst_7 = arith.constant dense<0.000000e+00> : vector<32x32xf32>
    %11 = tpu.matmul %7, %10, %cst_7 {dimension_numbers = #tpu.dot_dimension_numbers<[1], [0], [0], [1], [0, 0, 1, 1], [], []>} : vector<32x32xf32>, vector<32x32xf32>, vector<32x32xf32> -> vector<32x32xf32>
    %c2_i32 = arith.constant 2 : i32
    %c1_i32_8 = arith.constant 1 : i32
    %12 = arith.cmpi ne, %arg0, %c1_i32_8 : i32
    %13 = arith.extui %12 : i1 to i32
    %c0_i32_9 = arith.constant 0 : i32
    %14 = arith.cmpi ne, %13, %c0_i32_9 : i32
    scf.if %14 {
      %c0_12 = arith.constant 0 : index
      %c0_13 = arith.constant 0 : index
      %18 = vector.load %arg4[%c0_12, %c0_13] : memref<32x32xf32, #tpu.memory_space<vmem>>, vector<32x32xf32>
      tpu.vector_store %arg4[%c0_12, %c0_13], %11 {strides = array<i32>} : memref<32x32xf32, #tpu.memory_space<vmem>>, vector<32x32xf32>,
    } else {
    }
    %c1_i32_10 = arith.constant 1 : i32
    %15 = arith.cmpi eq, %arg0, %c1_i32_10 : i32
    %16 = arith.extui %15 : i1 to i32
    %c0_i32_11 = arith.constant 0 : i32
    %17 = arith.cmpi ne, %16, %c0_i32_11 : i32
    scf.if %17 {
      %c0_12 = arith.constant 0 : index
      %c0_13 = arith.constant 0 : index
      %18 = vector.load %arg2[%c0_12, %c0_13] : memref<1x32xf32, #tpu.memory_space<vmem>>, vector<1x32xf32>
      %cst_14 = arith.constant dense<0.000000e+00> : vector<1x32xf32>
      %19 = tpu.matmul %18, %11, %cst_14 {dimension_numbers = #tpu.dot_dimension_numbers<[1], [0], [0], [1], [0, 0, 1, 1], [], []>} : vector<1x32xf32>, vector<32x32xf32>, vector<1x32xf32> -> vector<1x32xf32>
      %20 = vector.extract_strided_slice %19 {offsets = [0, 0], sizes = [1, 16], strides = [1, 1]} : vector<1x32xf32> to vector<1x16xf32>
      %21 = vector.extract_strided_slice %19 {offsets = [0, 16], sizes = [1, 16], strides = [1, 1]} : vector<1x32xf32> to vector<1x16xf32>
      %22 = arith.mulf %20, %20 : vector<1x16xf32>
      %23 = arith.mulf %21, %21 : vector<1x16xf32>
      %24 = arith.addf %22, %23 : vector<1x16xf32>
      %c0_15 = arith.constant 0 : index
      %c0_16 = arith.constant 0 : index
      %25 = vector.load %arg3[%c0_15, %c0_16] : memref<1x16xf32, #tpu.memory_space<vmem>>, vector<1x16xf32>
      tpu.vector_store %arg3[%c0_15, %c0_16], %24 {strides = array<i32>} : memref<1x16xf32, #tpu.memory_space<vmem>>, vector<1x16xf32>,
    } else {
    }
    return
  }
  func.func @transform_0(%arg0: i32) -> (i32, i32, i32) {
    %c0_i32 = arith.constant 0 : i32
    %c0_i32_0 = arith.constant 0 : i32
    %c0_i32_1 = arith.constant 0 : i32
    return %arg0, %c0_i32, %c0_i32_0 : i32, i32, i32
  }
  func.func @transform_1(%arg0: i32) -> (i32, i32) {
    %c0_i32 = arith.constant 0 : i32
    %c0_i32_0 = arith.constant 0 : i32
    %c0_i32_1 = arith.constant 0 : i32
    return %c0_i32, %c0_i32_0 : i32, i32
  }
  func.func @transform_2(%arg0: i32) -> (i32, i32) {
    %c0_i32 = arith.constant 0 : i32
    %c0_i32_0 = arith.constant 0 : i32
    %c0_i32_1 = arith.constant 0 : i32
    return %c0_i32, %c0_i32_0 : i32, i32
  }
}

</mosaic_0001>

<llo_original>
// kernel: tpu_custom_call.1
$region0: #{tpu_custom_call.1}
  #allocation0 [shape = 'u32[]', space=smem, size = 0x4, offset = 0x4, fixed_abs, tag = 'smem constant byte address 0x4 - core index']
  #allocation1 [shape = 'u32[144,128]{1,0:T(1,128)}', space=vmem, size = 0x12000, scoped, tag = 'internal scratch']
  #allocation2 [shape = 'f32[32,32]{1,0:T(8,128)}', space=vmem, size = 0x4000, scoped, tag = 'scratch operand']
  %s0 = inlined_call_operand.hbm [shape: f32[4,32,32], index: 0, kind: input, shape index: {}]
  %s1 = inlined_call_operand.vmem [shape: f32[1,32], index: 1, kind: input, shape index: {}]
  %s2 = inlined_call_operand.hbm [shape: f32[1,16], index: 2, kind: output, shape index: {}]
  %s3 = sld [smem:[#allocation0]]
  $region57: #{tpu_custom_call.1} parent=0
    _
  %s5 = ssub.s32 1, %s3
  %s6 = scalar_select 0, %s5, %s3
  $region1: #{tpu_custom_call.1} parent=0
    #allocation3 [shape = 'u8[65536]{0}', space=vmem, size = 0x10000, scoped, tag = 'input window, operand 0']
    #allocation4 [shape = 's32[2]{0}', space=sflag, size = 0x8, scoped, tag = 'scoped memory for tpu_custom_call.1']
    #allocation5 [shape = 's32[2]{0}', space=sflag, size = 0x8, scoped, tag = 'scoped memory for tpu_custom_call.1']
    #allocation6 [shape = 'u8[512]{0}', space=vmem, size = 0x400, scoped, tag = 'output window, operand 0, single buffered']
    %7 = vsyncpa [#allocation4], 0
    %s8 = scalar_lea.sflag [#allocation4], 1
    %9 = vsyncpa %s8, 0
    %10 = vsyncpa [#allocation5], 0
    loop: start=0, step=1, limit=4
    $region2: #{tpu_custom_call.1} parent=1 // loop_pre_header
      _
    $region3: #{tpu_custom_call.1} parent=1 // loop_header
      %s12 = sphi 0, %s16
      %p13 = scmp.ge.s32.totalorder %s12, 4
      %s22 = sphi 0, %s24
      %s25 = sphi 0, %s22
      %s26 = sphi 0, %s25
      %s42 = sphi 0, %s26
      %s46 = sphi 0, %s46
      %s48 = sphi 0, %s46
      %s49 = sphi 0, %s48
      %s63 = sphi 0, %s49
      %s67 = sphi 0, %s67
      %s69 = sphi 0, %s67
      %s70 = sphi 0, %s69
      %s84 = sphi 0, %s70
    $region4: #{tpu_custom_call.1} parent=1 // loop_header_branch
      %15 = sbr.rel (%p13) target = $region8
    $region5: #{tpu_custom_call.1} parent=1 // loop_body
      %s17 = ssub.s32 %s12, 1
      %s18 = ssub.s32 %s12, 2
      %s19 = sadd.s32 %s12, 1
      %s20 = ssub.s32 %s12, %s19
      %p21 = scmp.eq.s32.totalorder %s20, 0
      %s23 = sadd.s32 %s22, 1
      %s24 = scalar_select %p21, %s22, %s23
      %p27 = pneg %p21
      %p28 = scmp.eq.s32.totalorder %s12, 1
      %p29 = por %p27, %p28
      %p30 = scmp.ne.s32.totalorder %s22, %s25
      %p31 = scmp.eq.s32.totalorder %s12, 0
      %p32 = por %p30, %p31
      %p33 = scmp.ne.s32.totalorder %s22, %s25
      %p34 = scmp.eq.s32.totalorder %s17, 1
      %p35 = por %p33, %p34
      %p36 = scmp.ne.s32.totalorder %s25, %s26
      %p37 = scmp.eq.s32.totalorder %s17, 0
      %p38 = por %p36, %p37
      %p39 = scmp.ne.s32.totalorder %s25, %s26
      %p40 = scmp.eq.s32.totalorder %s18, 1
      %p41 = por %p39, %p40
      %p43 = scmp.ne.s32.totalorder %s26, %s42
      %p44 = scmp.eq.s32.totalorder %s18, 0
      %p45 = por %p43, %p44
      %s47 = sadd.s32 %s46, 1
      %p50 = scmp.eq.s32.totalorder %s12, 1
      %p51 = scmp.ne.s32.totalorder %s46, %s48
      %p52 = scmp.eq.s32.totalorder %s12, 0
      %p53 = por %p51, %p52
      %p54 = scmp.ne.s32.totalorder %s46, %s48
      %p55 = scmp.eq.s32.totalorder %s17, 1
      %p56 = por %p54, %p55
      %p57 = scmp.ne.s32.totalorder %s48, %s49
      %p58 = scmp.eq.s32.totalorder %s17, 0
      %p59 = por %p57, %p58
      %p60 = scmp.ne.s32.totalorder %s48, %s49
      %p61 = scmp.eq.s32.totalorder %s18, 1
      %p62 = por %p60, %p61
      %p64 = scmp.ne.s32.totalorder %s49, %s63
      %p65 = scmp.eq.s32.totalorder %s18, 0
      %p66 = por %p64, %p65
      %s68 = sadd.s32 %s67, 1
      %p71 = scmp.eq.s32.totalorder %s12, 1
      %p72 = scmp.ne.s32.totalorder %s67, %s69
      %p73 = scmp.eq.s32.totalorder %s12, 0
      %p74 = por %p72, %p73
      %p75 = scmp.ne.s32.totalorder %s67, %s69
      %p76 = scmp.eq.s32.totalorder %s17, 1
      %p77 = por %p75, %p76
      %p78 = scmp.ne.s32.totalorder %s69, %s70
      %p79 = scmp.eq.s32.totalorder %s17, 0
      %p80 = por %p78, %p79
      %p81 = scmp.ne.s32.totalorder %s69, %s70
      %p82 = scmp.eq.s32.totalorder %s18, 1
      %p83 = por %p81, %p82
      %p85 = scmp.ne.s32.totalorder %s70, %s84
      %p86 = scmp.eq.s32.totalorder %s18, 0
      %p87 = por %p85, %p86
      %p88 = scmp.le.s32.totalorder 1, %s12
      %p89 = scmp.lt.s32.totalorder %s12, 3
      %p90 = pnand %p88, %p89
      %p91 = pneg %p90
      // Predicated region
      $region9: #{tpu_custom_call.1} parent=5 // pred_check
        _
      $region10: #{tpu_custom_call.1} parent=5 // pred_check_branch
        %93 = sbr.rel (%p90) target = $region12
      $region11: #{tpu_custom_call.1} parent=5 // pred_region
        %s94 = ssub.s32 %s12, 1
        // Predicated region
        $region13: #{tpu_custom_call.1} parent=11 // pred_check
          %p95 = pneg %p59
        $region14: #{tpu_custom_call.1} parent=11 // pred_check_branch
          %97 = sbr.rel (%p95) target = $region16
        $region15: #{tpu_custom_call.1} parent=11 // pred_region
          _
        $region16: #{tpu_custom_call.1} parent=11 // pred_fallthru
          _
      $region12: #{tpu_custom_call.1} parent=5 // pred_fallthru
        _
      %p98 = scmp.lt.s32.totalorder %s12, 2
      // Predicated region
      $region17: #{tpu_custom_call.1} parent=5 // pred_check
        %p99 = pneg %p98
      $region18: #{tpu_custom_call.1} parent=5 // pred_check_branch
        %101 = sbr.rel (%p99) target = $region20
      $region19: #{tpu_custom_call.1} parent=5 // pred_region
        // Predicated region
        $region21: #{tpu_custom_call.1} parent=19 // pred_check
          %p102 = pneg %p32
        $region22: #{tpu_custom_call.1} parent=19 // pred_check_branch
          %104 = sbr.rel (%p102) target = $region24
        $region23: #{tpu_custom_call.1} parent=19 // pred_region
          %s105 = sand.u32 %s22, 1
          %s106 = scalar_lea.sflag [#allocation4], %s105
          %s107 = sand.u32 %s22, 1
          %s108 = smul.addr %s107, 64
          %s109 = scalar_lea.vmem [#allocation3], %s108
          %s110 = smul.u32 2, %s12
          %s112 = ssub.s32 1024, 1024
          %113 = vsyncadd %s106, %s112
          %s114 = smul.addr %s110, 4
          %s115 = smul.addr %s114, 128
          %s116 = scalar_lea.hbm %s0, %s115
          %s117 = sshll.u32 %s109, 4
          %s118 = int_to_ptr.vmem [resolvable:$true] %s117
          %123 = dma.hbm_to_vmem [thread:$0]  %s116, 1024, %s118, %s106, 128, 128, 8
        $region24: #{tpu_custom_call.1} parent=19 // pred_fallthru
          _
      $region20: #{tpu_custom_call.1} parent=5 // pred_fallthru
        _
      %p124 = scmp.le.s32.totalorder 1, %s12
      %p125 = scmp.lt.s32.totalorder %s12, 3
      %p126 = pnand %p124, %p125
      %p127 = pneg %p126
      // Predicated region
      $region25: #{tpu_custom_call.1} parent=5 // pred_check
        _
      $region26: #{tpu_custom_call.1} parent=5 // pred_check_branch
        %129 = sbr.rel (%p126) target = $region28
      $region27: #{tpu_custom_call.1} parent=5 // pred_region
        %s130 = ssub.s32 %s12, 1
        %s131 = sand.u32 %s25, 1
        %s132 = scalar_lea.sflag [#allocation4], %s131
        %s133 = sand.u32 %s25, 1
        %s134 = smul.addr %s133, 64
        %s135 = scalar_lea.vmem [#allocation3], %s134
        // Predicated region
        $region29: #{tpu_custom_call.1} parent=27 // pred_check
          %p136 = pneg %p38
        $region30: #{tpu_custom_call.1} parent=27 // pred_check_branch
          %138 = sbr.rel (%p136) target = $region32
        $region31: #{tpu_custom_call.1} parent=27 // pred_region
          %139 = dma.done %s132, 1024
        $region32: #{tpu_custom_call.1} parent=27 // pred_fallthru
          _
        %s140 = sand.u32 %s25, 1
        %s141 = scalar_lea.sflag [#allocation4], %s140
        %s142 = sand.u32 %s25, 1
        %s143 = smul.addr %s142, 64
        %s144 = scalar_lea.vmem [#allocation3], %s143
        %p145 = pneg %p38
        %p146 = pneg %p35
        %p147 = pneg %p59
        %p148 = pneg %p56
        %p149 = pneg %p80
        %p150 = pneg %p77
        %s151 = smul.u32 2, %s17
        %p152 = scmp.eq.s32.totalorder %s17, 0
        // Predicated region
        $region33: #{tpu_custom_call.1} parent=27 // pred_check
          %p153 = pneg %p152
        $region34: #{tpu_custom_call.1} parent=27 // pred_check_branch
          %155 = sbr.rel (%p153) target = $region36
        $region35: #{tpu_custom_call.1} parent=27 // pred_region
          %v156 = vlaneseq
          %v157 = vshrl.u32 %v156, 7
          %v158 = vadd.s32 %v157, 8
          %v159 = vadd.s32 %v157, 16
          %v160 = vadd.s32 %v157, 24
          %v161 = vlaneseq
          %v162 = vand.u32 %v161, 127
          %vm163 = vcmp.eq.s32.totalorder %v157, %v162
          %vm164 = vcmp.eq.s32.totalorder %v158, %v162
          %vm165 = vcmp.eq.s32.totalorder %v159, %v162
          %vm166 = vcmp.eq.s32.totalorder %v160, %v162
          %v167 = vsel %vm163, 1, 0
          %v168 = vsel %vm164, 1, 0
          %v169 = vsel %vm165, 1, 0
          %v170 = vsel %vm166, 1, 0
          %v171 = vcvt.s32.f32 %v167
          %v172 = vcvt.s32.f32 %v168
          %v173 = vcvt.s32.f32 %v169
          %v174 = vcvt.s32.f32 %v170
          %vm175 = vcmask 261120
          %176 = vst.msk [vmem:[#allocation2] sm:$0xff] %vm175, %v171
          %177 = vst.msk [vmem:[#allocation2 + $0x8] sm:$0xff] %vm175, %v172
          %178 = vst.msk [vmem:[#allocation2 + $0x10] sm:$0xff] %vm175, %v173
          %179 = vst.msk [vmem:[#allocation2 + $0x18] sm:$0xff] %vm175, %v174
        $region36: #{tpu_custom_call.1} parent=27 // pred_fallthru
          _
        %v180 = vld [vmem:[#allocation2] sm:$0xff]
        %v181 = vld [vmem:[#allocation2 + $0x8] sm:$0xff]
        %v182 = vld [vmem:[#allocation2 + $0x10] sm:$0xff]
        %v183 = vld [vmem:[#allocation2 + $0x18] sm:$0xff]
        %v184 = vld [vmem:[%s135] sm:$0xff]
        %v185 = vld [vmem:[%s135 + $0x8] sm:$0xff]
        %v186 = vld [vmem:[%s135 + $0x10] sm:$0xff]
        %v187 = vld [vmem:[%s135 + $0x18] sm:$0xff]
        %vm188 = vcmask 261120
        %v190 = vsel %vm188, %v180, 0
        %v193 = vsel %vm188, %v181, 0
        %v196 = vsel %vm188, %v182, 0
        %v199 = vsel %vm188, %v183, 0
        %201 = vmatprep.subr.mxu0 0.0
        %202 = vmatpush1.msra.mxu0 0.0
        %203 = vmatprep.subr.mxu0 0.0
        %204 = vmatpush1.msra.mxu0 0.0
        %205 = vmatprep.subr.mxu0 0.0
        %206 = vmatpush1.msra.mxu0 0.0
        %207 = vmatprep.subr.mxu0 0.0
        %208 = vmatpush1.msra.mxu0 0.0
        %209 = vmatprep.subr.mxu0 0.0
        %210 = vmatpush1.msra.mxu0 0.0
        %211 = vmatprep.subr.mxu0 0.0
        %212 = vmatpush1.msra.mxu0 0.0
        %213 = vmatprep.subr.mxu0 0.0
        %214 = vmatpush1.msra.mxu0 0.0
        %215 = vmatprep.subr.mxu0 0.0
        %216 = vmatpush1.msra.mxu0 0.0
        %217 = vmatprep.subr.mxu0 0.0
        %218 = vmatpush1.msra.mxu0 0.0
        %219 = vmatprep.subr.mxu0 0.0
        %220 = vmatpush1.msra.mxu0 0.0
        %221 = vmatprep.subr.mxu0 0.0
        %222 = vmatpush1.msra.mxu0 0.0
        %223 = vmatprep.subr.mxu0 0.0
        %224 = vmatpush1.msra.mxu0 0.0
        %225 = vmatprep.subr.mxu0 0.0
        %226 = vmatpush1.msra.mxu0 %v187
        %227 = vmatprep.subr.mxu0 0.0
        %228 = vmatpush1.msra.mxu0 %v186
        %229 = vmatprep.subr.mxu0 0.0
        %230 = vmatpush1.msra.mxu0 %v185
        %231 = vmatprep.subr.mxu0 0.0
        %232 = vmatpush1.msra.mxu0 %v184
        %233 = vmatprep.subr.mxu0 0.0
        %234 = vmatpush2.msra.mxu0 0.0
        %235 = vmatprep.subr.mxu0 0.0
        %236 = vmatpush2.msra.mxu0 0.0
        %237 = vmatprep.subr.mxu0 0.0
        %238 = vmatpush2.msra.mxu0 0.0
        %239 = vmatprep.subr.mxu0 0.0
        %240 = vmatpush2.msra.mxu0 0.0
        %241 = vmatprep.subr.mxu0 0.0
        %242 = vmatpush2.msra.mxu0 0.0
        %243 = vmatprep.subr.mxu0 0.0
        %244 = vmatpush2.msra.mxu0 0.0
        %245 = vmatprep.subr.mxu0 0.0
        %246 = vmatpush2.msra.mxu0 0.0
        %247 = vmatprep.subr.mxu0 0.0
        %248 = vmatpush2.msra.mxu0 0.0
        %249 = vmatprep.subr.mxu0 0.0
        %250 = vmatpush2.msra.mxu0 0.0
        %251 = vmatprep.subr.mxu0 0.0
        %252 = vmatpush2.msra.mxu0 0.0
        %253 = vmatprep.subr.mxu0 0.0
        %254 = vmatpush2.msra.mxu0 0.0
        %255 = vmatprep.subr.mxu0 0.0
        %256 = vmatpush2.msra.mxu0 0.0
        %257 = vmatprep.subr.mxu0 0.0
        %258 = vmatpush2.msra.mxu0 0.0
        %259 = vmatprep.subr.mxu0 0.0
        %260 = vmatpush2.msra.mxu0 0.0
        %261 = vmatprep.subr.mxu0 0.0
        %262 = vmatpush2.msra.mxu0 0.0
        %263 = vmatprep.subr.mxu0 0.0
        %264 = vmatpush2.msra.mxu0 0.0
        %265 = vmatprep.mubr.f32.mxu0 0.0
        %266 = vmatmul.mubr.f32.gmra.mxu0 %v190
        %v267 = vpop.f32.mrf.mxu0
        %v268 = vadd.f32 0.0, %v267
        %v269 = vpop.f32.mrf.mxu0
        %270 = vmatprep.mubr.f32.mxu0 0.0
        %271 = vmatmul.mubr.f32.gmra.mxu0 %v193
        %v272 = vpop.f32.mrf.mxu0
        %v273 = vadd.f32 0.0, %v272
        %v274 = vpop.f32.mrf.mxu0
        %275 = vmatprep.mubr.f32.mxu0 0.0
        %276 = vmatmul.mubr.f32.gmra.mxu0 %v196
        %v277 = vpop.f32.mrf.mxu0
        %v278 = vadd.f32 0.0, %v277
        %v279 = vpop.f32.mrf.mxu0
        %280 = vmatprep.mubr.f32.mxu0 0.0
        %281 = vmatmul.mubr.f32.gmra.mxu0 %v199
        %v282 = vpop.f32.mrf.mxu0
        %v283 = vadd.f32 0.0, %v282
        %v284 = vpop.f32.mrf.mxu0
        %285 = vdwg.mxu0
        %s286 = scalar_lea.vmem %s135, 32 [#allocation3]
        %v287 = vld [vmem:[%s286] sm:$0xff]
        %v288 = vld [vmem:[%s286 + $0x8] sm:$0xff]
        %v289 = vld [vmem:[%s286 + $0x10] sm:$0xff]
        %v290 = vld [vmem:[%s286 + $0x18] sm:$0xff]
        %v292 = vsel %vm188, %v268, 0
        %v295 = vsel %vm188, %v273, 0
        %v298 = vsel %vm188, %v278, 0
        %v301 = vsel %vm188, %v283, 0
        %303 = vmatprep.subr.mxu0 0.0
        %304 = vmatpush1.msra.mxu0 0.0
        %305 = vmatprep.subr.mxu0 0.0
        %306 = vmatpush1.msra.mxu0 0.0
        %307 = vmatprep.subr.mxu0 0.0
        %308 = vmatpush1.msra.mxu0 0.0
        %309 = vmatprep.subr.mxu0 0.0
        %310 = vmatpush1.msra.mxu0 0.0
        %311 = vmatprep.subr.mxu0 0.0
        %312 = vmatpush1.msra.mxu0 0.0
        %313 = vmatprep.subr.mxu0 0.0
        %314 = vmatpush1.msra.mxu0 0.0
        %315 = vmatprep.subr.mxu0 0.0
        %316 = vmatpush1.msra.mxu0 0.0
        %317 = vmatprep.subr.mxu0 0.0
        %318 = vmatpush1.msra.mxu0 0.0
        %319 = vmatprep.subr.mxu0 0.0
        %320 = vmatpush1.msra.mxu0 0.0
        %321 = vmatprep.subr.mxu0 0.0
        %322 = vmatpush1.msra.mxu0 0.0
        %323 = vmatprep.subr.mxu0 0.0
        %324 = vmatpush1.msra.mxu0 0.0
        %325 = vmatprep.subr.mxu0 0.0
        %326 = vmatpush1.msra.mxu0 0.0
        %327 = vmatprep.subr.mxu0 0.0
        %328 = vmatpush1.msra.mxu0 %v290
        %329 = vmatprep.subr.mxu0 0.0
        %330 = vmatpush1.msra.mxu0 %v289
        %331 = vmatprep.subr.mxu0 0.0
        %332 = vmatpush1.msra.mxu0 %v288
        %333 = vmatprep.subr.mxu0 0.0
        %334 = vmatpush1.msra.mxu0 %v287
        %335 = vmatprep.subr.mxu0 0.0
        %336 = vmatpush2.msra.mxu0 0.0
        %337 = vmatprep.subr.mxu0 0.0
        %338 = vmatpush2.msra.mxu0 0.0
        %339 = vmatprep.subr.mxu0 0.0
        %340 = vmatpush2.msra.mxu0 0.0
        %341 = vmatprep.subr.mxu0 0.0
        %342 = vmatpush2.msra.mxu0 0.0
        %343 = vmatprep.subr.mxu0 0.0
        %344 = vmatpush2.msra.mxu0 0.0
        %345 = vmatprep.subr.mxu0 0.0
        %346 = vmatpush2.msra.mxu0 0.0
        %347 = vmatprep.subr.mxu0 0.0
        %348 = vmatpush2.msra.mxu0 0.0
        %349 = vmatprep.subr.mxu0 0.0
        %350 = vmatpush2.msra.mxu0 0.0
        %351 = vmatprep.subr.mxu0 0.0
        %352 = vmatpush2.msra.mxu0 0.0
        %353 = vmatprep.subr.mxu0 0.0
        %354 = vmatpush2.msra.mxu0 0.0
        %355 = vmatprep.subr.mxu0 0.0
        %356 = vmatpush2.msra.mxu0 0.0
        %357 = vmatprep.subr.mxu0 0.0
        %358 = vmatpush2.msra.mxu0 0.0
        %359 = vmatprep.subr.mxu0 0.0
        %360 = vmatpush2.msra.mxu0 0.0
        %361 = vmatprep.subr.mxu0 0.0
        %362 = vmatpush2.msra.mxu0 0.0
        %363 = vmatprep.subr.mxu0 0.0
        %364 = vmatpush2.msra.mxu0 0.0
        %365 = vmatprep.subr.mxu0 0.0
        %366 = vmatpush2.msra.mxu0 0.0
        %367 = vmatprep.mubr.f32.mxu0 0.0
        %368 = vmatmul.mubr.f32.gmra.mxu0 %v292
        %v369 = vpop.f32.mrf.mxu0
        %v370 = vadd.f32 0.0, %v369
        %v371 = vpop.f32.mrf.mxu0
        %372 = vmatprep.mubr.f32.mxu0 0.0
        %373 = vmatmul.mubr.f32.gmra.mxu0 %v295
        %v374 = vpop.f32.mrf.mxu0
        %v375 = vadd.f32 0.0, %v374
        %v376 = vpop.f32.mrf.mxu0
        %377 = vmatprep.mubr.f32.mxu0 0.0
        %378 = vmatmul.mubr.f32.gmra.mxu0 %v298
        %v379 = vpop.f32.mrf.mxu0
        %v380 = vadd.f32 0.0, %v379
        %v381 = vpop.f32.mrf.mxu0
        %382 = vmatprep.mubr.f32.mxu0 0.0
        %383 = vmatmul.mubr.f32.gmra.mxu0 %v301
        %v384 = vpop.f32.mrf.mxu0
        %v385 = vadd.f32 0.0, %v384
        %v386 = vpop.f32.mrf.mxu0
        %387 = vdwg.mxu0
        %p388 = scmp.ne.s32.totalorder %s17, 1
        // Predicated region
        $region37: #{tpu_custom_call.1} parent=27 // pred_check
          %p389 = pneg %p388
        $region38: #{tpu_custom_call.1} parent=27 // pred_check_branch
          %391 = sbr.rel (%p389) target = $region40
        $region39: #{tpu_custom_call.1} parent=27 // pred_region
          %392 = vst.msk [vmem:[#allocation2] sm:$0xff] %vm188, %v370
          %393 = vst.msk [vmem:[#allocation2 + $0x8] sm:$0xff] %vm188, %v375
          %394 = vst.msk [vmem:[#allocation2 + $0x10] sm:$0xff] %vm188, %v380
          %395 = vst.msk [vmem:[#allocation2 + $0x18] sm:$0xff] %vm188, %v385
        $region40: #{tpu_custom_call.1} parent=27 // pred_fallthru
          _
        %p396 = scmp.eq.s32.totalorder %s17, 1
        // Predicated region
        $region41: #{tpu_custom_call.1} parent=27 // pred_check
          %p397 = pneg %p396
        $region42: #{tpu_custom_call.1} parent=27 // pred_check_branch
          %399 = sbr.rel (%p397) target = $region44
        $region43: #{tpu_custom_call.1} parent=27 // pred_region
          %v400 = vld [vmem:[%s1] sm:$0x1]
          %v402 = vsel %vm188, %v400, 0
          %404 = vmatprep.subr.mxu0 0.0
          %405 = vmatpush1.msra.mxu0 0.0
          %406 = vmatprep.subr.mxu0 0.0
          %407 = vmatpush1.msra.mxu0 0.0
          %408 = vmatprep.subr.mxu0 0.0
          %409 = vmatpush1.msra.mxu0 0.0
          %410 = vmatprep.subr.mxu0 0.0
          %411 = vmatpush1.msra.mxu0 0.0
          %412 = vmatprep.subr.mxu0 0.0
          %413 = vmatpush1.msra.mxu0 0.0
          %414 = vmatprep.subr.mxu0 0.0
          %415 = vmatpush1.msra.mxu0 0.0
          %416 = vmatprep.subr.mxu0 0.0
          %417 = vmatpush1.msra.mxu0 0.0
          %418 = vmatprep.subr.mxu0 0.0
          %419 = vmatpush1.msra.mxu0 0.0
          %420 = vmatprep.subr.mxu0 0.0
          %421 = vmatpush1.msra.mxu0 0.0
          %422 = vmatprep.subr.mxu0 0.0
          %423 = vmatpush1.msra.mxu0 0.0
          %424 = vmatprep.subr.mxu0 0.0
          %425 = vmatpush1.msra.mxu0 0.0
          %426 = vmatprep.subr.mxu0 0.0
          %427 = vmatpush1.msra.mxu0 0.0
          %428 = vmatprep.subr.mxu0 0.0
          %429 = vmatpush1.msra.mxu0 %v385
          %430 = vmatprep.subr.mxu0 0.0
          %431 = vmatpush1.msra.mxu0 %v380
          %432 = vmatprep.subr.mxu0 0.0
          %433 = vmatpush1.msra.mxu0 %v375
          %434 = vmatprep.subr.mxu0 0.0
          %435 = vmatpush1.msra.mxu0 %v370
          %436 = vmatprep.subr.mxu0 0.0
          %437 = vmatpush2.msra.mxu0 0.0
          %438 = vmatprep.subr.mxu0 0.0
          %439 = vmatpush2.msra.mxu0 0.0
          %440 = vmatprep.subr.mxu0 0.0
          %441 = vmatpush2.msra.mxu0 0.0
          %442 = vmatprep.subr.mxu0 0.0
          %443 = vmatpush2.msra.mxu0 0.0
          %444 = vmatprep.subr.mxu0 0.0
          %445 = vmatpush2.msra.mxu0 0.0
          %446 = vmatprep.subr.mxu0 0.0
          %447 = vmatpush2.msra.mxu0 0.0
          %448 = vmatprep.subr.mxu0 0.0
          %449 = vmatpush2.msra.mxu0 0.0
          %450 = vmatprep.subr.mxu0 0.0
          %451 = vmatpush2.msra.mxu0 0.0
          %452 = vmatprep.subr.mxu0 0.0
          %453 = vmatpush2.msra.mxu0 0.0
          %454 = vmatprep.subr.mxu0 0.0
          %455 = vmatpush2.msra.mxu0 0.0
          %456 = vmatprep.subr.mxu0 0.0
          %457 = vmatpush2.msra.mxu0 0.0
          %458 = vmatprep.subr.mxu0 0.0
          %459 = vmatpush2.msra.mxu0 0.0
          %460 = vmatprep.subr.mxu0 0.0
          %461 = vmatpush2.msra.mxu0 0.0
          %462 = vmatprep.subr.mxu0 0.0
          %463 = vmatpush2.msra.mxu0 0.0
          %464 = vmatprep.subr.mxu0 0.0
          %465 = vmatpush2.msra.mxu0 0.0
          %466 = vmatprep.subr.mxu0 0.0
          %467 = vmatpush2.msra.mxu0 0.0
          %468 = vmatprep.mubr.f32.mxu0 0.0
          %469 = vmatmul.mubr.f32.gmra.mxu0 %v402
          %v470 = vpop.f32.mrf.mxu0
          %v471 = vadd.f32 0.0, %v470
          %v472 = vpop.f32.mrf.mxu0
          %473 = vdwg.mxu0
          %v474 = vmul.f32 %v471, %v471
          %476 = vrot.lane.b32.xlu0 %v474, 112
          %v477 = vpop.permute.xlu0 %476
          %v479 = vadd.f32 %v474, %v477
          %vm480 = vcmask 122880
          %481 = vst.msk [vmem:[#allocation6] sm:$0x1] %vm480, %v479
        $region44: #{tpu_custom_call.1} parent=27 // pred_fallthru
          _
        // Predicated region
        $region45: #{tpu_custom_call.1} parent=27 // pred_check
          %p482 = pneg %p77
        $region46: #{tpu_custom_call.1} parent=27 // pred_check_branch
          %484 = sbr.rel (%p482) target = $region48
        $region47: #{tpu_custom_call.1} parent=27 // pred_region
          %s486 = ssub.s32 16, 16
          %487 = vsyncadd [#allocation5], %s486
          %s489 = sshll.u32 [#allocation6], 4
          %s490 = int_to_ptr.vmem [resolvable:$true] %s489
          %492 = dma.vmem_to_hbm [thread:$0]  %s490, 16, %s2, [#allocation5]
        $region48: #{tpu_custom_call.1} parent=27 // pred_fallthru
          _
        // Predicated region
        $region49: #{tpu_custom_call.1} parent=27 // pred_check
          %p493 = pneg %p77
        $region50: #{tpu_custom_call.1} parent=27 // pred_check_branch
          %495 = sbr.rel (%p493) target = $region52
        $region51: #{tpu_custom_call.1} parent=27 // pred_region
          %496 = dma.done [#allocation5], 16
        $region52: #{tpu_custom_call.1} parent=27 // pred_fallthru
          _
      $region28: #{tpu_custom_call.1} parent=5 // pred_fallthru
        _
      %p497 = scmp.le.s32.totalorder 2, %s12
      // Predicated region
      $region53: #{tpu_custom_call.1} parent=5 // pred_check
        %p498 = pneg %p497
      $region54: #{tpu_custom_call.1} parent=5 // pred_check_branch
        %500 = sbr.rel (%p498) target = $region56
      $region55: #{tpu_custom_call.1} parent=5 // pred_region
        %s501 = ssub.s32 %s12, 2
      $region56: #{tpu_custom_call.1} parent=5 // pred_fallthru
        _
    $region6: #{tpu_custom_call.1} parent=1 // loop_footer
      %s16 = sadd.s32 1, %s12
    $region7: #{tpu_custom_call.1} parent=1 // loop_footer_branch
      %11 = sbr.rel target = $region3
    $region8: #{tpu_custom_call.1} parent=1 // loop_exit
      _
    %502 = vsyncpa [#allocation4], 1
    %s503 = scalar_lea.sflag [#allocation4], 1
    %504 = vsyncpa %s503, 1
    %505 = vsyncpa [#allocation5], 1
    %s506 = scalar_lea.sflag [#allocation5], 1
    %507 = vsyncpa %s506, 1

</llo_original>
